<compile_context>
chip_gen: v6e
topology: v6e:2x2x1
jax: 0.10.0
libtpu: 0.0.40
codegen_flags: <defaults>
</compile_context>

<pallas_src>
import numpy as np
import jax
import jax.numpy as jnp
from jax.experimental import pallas as pl
from jax.experimental.pallas import tpu as pltpu


def _bsl_kernel(logits_ref, target_ref, w_row_ref, logm_ref, out_ref):
    # logits_ref: (TN, C) f32/bf16   target_ref: (TN, 1) i32
    # w_row_ref:  (TN, 1) f32 (per-sample weight, 0 for padded rows)
    # logm_ref:   (1, C)  f32
    # out_ref:    (8, 128) f32 partials: [0,0] = sum w_i*(lse-tgt), [0,1] = sum w_i
    adj = logits_ref[...].astype(jnp.float32) + logm_ref[...]   # logit adjustment
    tn, c = adj.shape

    # boolean target mask (no float one-hot materialization / extra multiply)
    cls_idx = jax.lax.broadcasted_iota(jnp.int32, (tn, c), 1)
    mask = cls_idx == target_ref[...]            # (TN, C); sentinel target -> all False

    # numerically stable logsumexp per row
    m = jnp.max(adj, axis=-1, keepdims=True)                     # (TN, 1)
    lse = m + jnp.log(jnp.sum(jnp.exp(adj - m), axis=-1, keepdims=True))

    tgt_logit = jnp.sum(jnp.where(mask, adj, 0.0), axis=-1, keepdims=True)  # (TN, 1)
    w_i = w_row_ref[...]                          # (TN, 1); gathered in the wrapper

    num = jnp.sum(w_i * (lse - tgt_logit))       # weighted NLL partial sum
    den = jnp.sum(w_i)                           # weight partial sum

    # lane-dense (8,128) partial block: num at [0,0], den at [0,1], zeros elsewhere
    row = jax.lax.broadcasted_iota(jnp.int32, (8, 128), 0)
    lane = jax.lax.broadcasted_iota(jnp.int32, (8, 128), 1)
    zeros = jnp.zeros((8, 128), jnp.float32)
    out_ref[...] = jnp.where((row == 0) & (lane == 0), num,
                             jnp.where((row == 0) & (lane == 1), den, zeros))


_MAX_TILE_N = 32768  # cap per-tile rows so f32 partial sums stay numerically tame


def _vmem_plan():
    """Return (working_set_budget_bytes, vmem_limit_bytes, is_small_vmem_chip)."""
    try:
        cap = int(getattr(pltpu.get_tpu_info(), "vmem_capacity_bytes", 64 << 20))
    except Exception:
        cap = 64 << 20  # conservative fallback (v7x per-TC size)
    small = cap <= (64 << 20)          # v7x: 64 MiB per TensorCore
    if small:
        vmem_limit = min(cap - (8 << 20), 48 << 20)
    else:                              # v5e / v6e: 128 MiB physical VMEM
        vmem_limit = 96 << 20
    vmem_limit = max(vmem_limit, 32 << 20)
    ws_budget = int(0.7 * vmem_limit)  # headroom for compiler-internal scratch
    return ws_budget, vmem_limit, small


def _pick_tile_n(n, c, itemsize, ws_budget, align):
    # Per-row VMEM footprint:
    #   2 x logits tile (double-buffered, HBM dtype)           -> 2*c*itemsize
    #   f32 `adj` + one streamed f32 elementwise temp (conserv) -> 3*c*4
    #   target / per-sample weight (double-buffered)            -> ~32 B
    per_row = 2 * c * itemsize + 3 * c * 4 + 32
    tile = ws_budget // per_row
    tile = max(align, (tile // align) * align)
    tile = min(tile, _MAX_TILE_N)
    n_up = ((n + align - 1) // align) * align
    return min(tile, n_up)


def balanced_softmax_loss(logits, target, cls_num_list, per_cls_weights=None,
                          tile_n=None):
    """logits: (N, C) float32 or bfloat16, target: (N,) int."""
    n, c = logits.shape
    m_list = jnp.asarray(cls_num_list, dtype=jnp.float32)
    log_m = jnp.log(m_list + 1e-12).reshape(1, c)
    if per_cls_weights is None:
        w_vec = jnp.ones((c,), dtype=jnp.float32)
    else:
        w_vec = jnp.asarray(per_cls_weights, dtype=jnp.float32).reshape(c)
    tgt = target.astype(jnp.int32)

    # Per-sample weight gather done ONCE in the wrapper (was a (TN,C)
    # broadcast-select + cross-lane reduce per tile inside the kernel).
    # TODO(synk): out-of-range targets are clipped by jnp.take instead of
    # raising like torch.nn.functional.cross_entropy would.
    w_row = jnp.take(w_vec, tgt, axis=0).astype(jnp.float32).reshape(n, 1)
    tgt = tgt.reshape(n, 1)

    itemsize = jnp.dtype(logits.dtype).itemsize
    align = 16 if itemsize == 2 else 8           # bf16 packs 2 rows per sublane
    ws_budget, vmem_limit, small_vmem = _vmem_plan()

    if tile_n is None:
        tile_n = _pick_tile_n(n, c, itemsize, ws_budget, align)
    tile_n = max(align, (tile_n // align) * align)

    # Guarantee >=2 grid steps (>=4 on the 2-TensorCore chip) when the batch
    # allows it, so the "parallel" grid axis feeds both cores / the pipeline.
    n_up = ((n + align - 1) // align) * align
    min_blocks = 4 if small_vmem else 2
    cap_tile = -(-n_up // min_blocks)
    cap_tile = ((cap_tile + align - 1) // align) * align
    tile_n = min(tile_n, max(align, cap_tile))

    num_blocks = -(-n // tile_n)
    n_pad = num_blocks * tile_n
    if n_pad != n:
        # zero logits + sentinel target + zero weight => padded rows contribute nothing
        logits = jnp.pad(logits, ((0, n_pad - n), (0, 0)))
        tgt = jnp.pad(tgt, ((0, n_pad - n), (0, 0)), constant_values=-1)
        w_row = jnp.pad(w_row, ((0, n_pad - n), (0, 0)))

    cost = pl.CostEstimate(
        flops=6 * n_pad * c,
        transcendentals=n_pad * c,
        bytes_accessed=n_pad * c * itemsize + 2 * n_pad * 4 + c * 4
                       + num_blocks * 8 * 128 * 4,
    )

    partials = pl.pallas_call(
        _bsl_kernel,
        out_shape=jax.ShapeDtypeStruct((num_blocks * 8, 128), jnp.float32),
        grid=(num_blocks,),
        in_specs=[
            pl.BlockSpec((tile_n, c), lambda i: (i, 0)),   # logits tile
            pl.BlockSpec((tile_n, 1), lambda i: (i, 0)),   # targets tile
            pl.BlockSpec((tile_n, 1), lambda i: (i, 0)),   # per-sample weights tile
            pl.BlockSpec((1, c), lambda i: (0, 0)),        # log(m_list) (constant)
        ],
        out_specs=pl.BlockSpec((8, 128), lambda i: (i, 0)),
        compiler_params=pltpu.CompilerParams(
            dimension_semantics=("parallel",),
            vmem_limit_bytes=int(vmem_limit)),
        cost_estimate=cost,
    )(logits, tgt, w_row, log_m)

    totals = jnp.sum(partials, axis=0)        # (128,): [0]=sum num, [1]=sum den
    return totals[0] / totals[1]


def _effective_num_weights(cls_num_list, beta=0.9999):
    cls_num = np.array(cls_num_list, dtype=np.float64)
    effective_num = 1.0 - np.power(beta, cls_num)
    per_cls_weights = (1.0 - beta) / effective_num
    per_cls_weights = per_cls_weights / np.sum(per_cls_weights) * len(cls_num_list)
    return per_cls_weights.astype(np.float32)


def _reference(logits, target, cls_num_list, per_cls_weights=None):
    m_list = jnp.asarray(cls_num_list, dtype=jnp.float32)
    adj = logits.astype(jnp.float32) + jnp.log(m_list + 1e-12)[None, :]
    logp = jax.nn.log_softmax(adj, axis=-1)
    nll = -jnp.take_along_axis(logp, target[:, None], axis=-1)[:, 0]
    if per_cls_weights is None:
        wv = jnp.ones((logits.shape[1],), jnp.float32)
    else:
        wv = jnp.asarray(per_cls_weights, jnp.float32)
    w = wv[target]
    return jnp.sum(w * nll) / jnp.sum(w)


if __name__ == "__main__":
    key = jax.random.PRNGKey(0)
    N, C = 12, 16  # batch, num classes (N not a multiple of 8 -> exercises padding)

    # deterministic long-tailed class count list (module __init__ input)
    cls_num_list = [int(1000 * (0.7 ** i)) + 1 for i in range(C)]
    per_cls_weights = _effective_num_weights(cls_num_list)  # reweight path enabled

    k1, k2 = jax.random.split(key)
    logits = jax.random.normal(k1, (N, C), dtype=jnp.float32)
    target = jax.random.randint(k2, (N,), 0, C, dtype=jnp.int32)

    # weighted (reweight_epoch != -1, epoch > reweight_epoch) path
    loss_w = jax.block_until_ready(
        balanced_softmax_loss(logits, target, cls_num_list, per_cls_weights))
    ref_w = _reference(logits, target, cls_num_list, per_cls_weights)
    assert jnp.allclose(loss_w, ref_w, rtol=1e-5, atol=1e-5), (loss_w, ref_w)

    # unweighted path (per_cls_weights is None)
    loss_u = jax.block_until_ready(
        balanced_softmax_loss(logits, target, cls_num_list, None))
    ref_u = _reference(logits, target, cls_num_list, None)
    assert jnp.allclose(loss_u, ref_u, rtol=1e-5, atol=1e-5), (loss_u, ref_u)

    # bf16 logits path (HBM traffic halved; upcast after load inside the kernel)
    logits_bf16 = logits.astype(jnp.bfloat16)
    loss_bf = jax.block_until_ready(
        balanced_softmax_loss(logits_bf16, target, cls_num_list, per_cls_weights))
    ref_bf = _reference(logits_bf16.astype(jnp.float32), target, cls_num_list,
                        per_cls_weights)
    assert jnp.allclose(loss_bf, ref_bf, rtol=1e-2, atol=1e-2), (loss_bf, ref_bf)

    print("KERNEL_OK")
</pallas_src>

<mosaic_0001>
module attributes {stable_mosaic.version = 11 : i64} {
  func.func @_bsl_kernel(%arg0: i32, %arg1: memref<8x16xf32, #tpu.memory_space<vmem>>, %arg2: memref<8x1xi32, #tpu.memory_space<vmem>>, %arg3: memref<8x1xf32, #tpu.memory_space<vmem>>, %arg4: memref<1x16xf32, #tpu.memory_space<vmem>>, %arg5: memref<8x128xf32, #tpu.memory_space<vmem>>) attributes {dimension_semantics = [#tpu.dimension_semantics<parallel>], iteration_bounds = array<i64: 2>, scalar_prefetch = 0 : i64, scratch_operands = 0 : i64, tpu.core_type = #tpu.core_type<tc>, window_params = [{transform_indices = @transform_0, window_bounds = array<i64: 8, 16>}, {transform_indices = @transform_1, window_bounds = array<i64: 8, 1>}, {transform_indices = @transform_2, window_bounds = array<i64: 8, 1>}, {pipeline_mode = #tpu.pipeline_mode<synchronous>, transform_indices = @transform_3, window_bounds = array<i64: 1, 16>}, {transform_indices = @transform_4, window_bounds = array<i64: 8, 128>}]} {
    %c0 = arith.constant 0 : index
    %c0_0 = arith.constant 0 : index
    %0 = vector.load %arg1[%c0, %c0_0] : memref<8x16xf32, #tpu.memory_space<vmem>>, vector<8x16xf32>
    %c0_1 = arith.constant 0 : index
    %c0_2 = arith.constant 0 : index
    %1 = vector.load %arg4[%c0_1, %c0_2] : memref<1x16xf32, #tpu.memory_space<vmem>>, vector<1x16xf32>
    %2 = vector.broadcast %1 : vector<1x16xf32> to vector<8x16xf32>
    %3 = arith.addf %0, %2 : vector<8x16xf32>
    %4 = tpu.iota {dimensions = array<i32: 1>} : vector<8x16xi32>
    %c0_3 = arith.constant 0 : index
    %c0_4 = arith.constant 0 : index
    %5 = vector.load %arg2[%c0_3, %c0_4] : memref<8x1xi32, #tpu.memory_space<vmem>>, vector<8x1xi32>
    %6 = vector.broadcast %5 : vector<8x1xi32> to vector<8x16xi32>
    %7 = arith.cmpi eq, %4, %6 : vector<8x16xi32>
    %cst = arith.constant dense<0xFF800000> : vector<8xf32>
    %8 = vector.multi_reduction <maximumf>, %3, %cst [1] : vector<8x16xf32> to vector<8xf32>
    %9 = vector.shape_cast %8 : vector<8xf32> to vector<8x1xf32>
    %10 = vector.broadcast %9 : vector<8x1xf32> to vector<8x16xf32>
    %11 = arith.subf %3, %10 : vector<8x16xf32>
    %12 = math.exp %11 : vector<8x16xf32>
    %cst_5 = arith.constant dense<0.000000e+00> : vector<8xf32>
    %13 = vector.multi_reduction <add>, %12, %cst_5 [1] : vector<8x16xf32> to vector<8xf32>
    %14 = vector.shape_cast %13 : vector<8xf32> to vector<8x1xf32>
    %15 = math.log %14 : vector<8x1xf32>
    %16 = arith.addf %9, %15 : vector<8x1xf32>
    %cst_6 = arith.constant 0.000000e+00 : f32
    %17 = vector.broadcast %cst_6 : f32 to vector<8x16xf32>
    %18 = arith.select %7, %3, %17 : vector<8x16xi1>, vector<8x16xf32>
    %cst_7 = arith.constant dense<0.000000e+00> : vector<8xf32>
    %19 = vector.multi_reduction <add>, %18, %cst_7 [1] : vector<8x16xf32> to vector<8xf32>
    %20 = vector.shape_cast %19 : vector<8xf32> to vector<8x1xf32>
    %c0_8 = arith.constant 0 : index
    %c0_9 = arith.constant 0 : index
    %21 = vector.load %arg3[%c0_8, %c0_9] : memref<8x1xf32, #tpu.memory_space<vmem>>, vector<8x1xf32>
    %22 = arith.subf %16, %20 : vector<8x1xf32>
    %23 = arith.mulf %21, %22 : vector<8x1xf32>
    %24 = vector.shape_cast %23 : vector<8x1xf32> to vector<1x8x1xf32>
    %cst_10 = arith.constant dense<0.000000e+00> : vector<1xf32>
    %25 = vector.multi_reduction <add>, %24, %cst_10 [1, 2] : vector<1x8x1xf32> to vector<1xf32>
    %26 = vector.shape_cast %25 : vector<1xf32> to vector<1x1x1xf32>
    %27 = vector.extract %26[0, 0, 0] : f32 from vector<1x1x1xf32>
    %28 = vector.shape_cast %21 : vector<8x1xf32> to vector<1x8x1xf32>
    %cst_11 = arith.constant dense<0.000000e+00> : vector<1xf32>
    %29 = vector.multi_reduction <add>, %28, %cst_11 [1, 2] : vector<1x8x1xf32> to vector<1xf32>
    %30 = vector.shape_cast %29 : vector<1xf32> to vector<1x1x1xf32>
    %31 = vector.extract %30[0, 0, 0] : f32 from vector<1x1x1xf32>
    %32 = tpu.iota {dimensions = array<i32: 0>} : vector<8x128xi32>
    %33 = tpu.iota {dimensions = array<i32: 1>} : vector<8x128xi32>
    %cst_12 = arith.constant 0.000000e+00 : f32
    %34 = vector.broadcast %cst_12 : f32 to vector<8x128xf32>
    %c0_i32 = arith.constant 0 : i32
    %35 = vector.broadcast %c0_i32 : i32 to vector<8x128xi32>
    %36 = arith.cmpi eq, %32, %35 : vector<8x128xi32>
    %c0_i32_13 = arith.constant 0 : i32
    %37 = vector.broadcast %c0_i32_13 : i32 to vector<8x128xi32>
    %38 = arith.cmpi eq, %33, %37 : vector<8x128xi32>
    %39 = arith.andi %36, %38 : vector<8x128xi1>
    %c0_i32_14 = arith.constant 0 : i32
    %40 = vector.broadcast %c0_i32_14 : i32 to vector<8x128xi32>
    %41 = arith.cmpi eq, %32, %40 : vector<8x128xi32>
    %c1_i32 = arith.constant 1 : i32
    %42 = vector.broadcast %c1_i32 : i32 to vector<8x128xi32>
    %43 = arith.cmpi eq, %33, %42 : vector<8x128xi32>
    %44 = arith.andi %41, %43 : vector<8x128xi1>
    %45 = vector.broadcast %31 : f32 to vector<8x128xf32>
    %46 = arith.select %44, %45, %34 : vector<8x128xi1>, vector<8x128xf32>
    %47 = vector.broadcast %27 : f32 to vector<8x128xf32>
    %48 = arith.select %39, %47, %46 : vector<8x128xi1>, vector<8x128xf32>
    %c0_15 = arith.constant 0 : index
    %c0_16 = arith.constant 0 : index
    %49 = vector.load %arg5[%c0_15, %c0_16] : memref<8x128xf32, #tpu.memory_space<vmem>>, vector<8x128xf32>
    tpu.vector_store %arg5[%c0_15, %c0_16], %48 {strides = array<i32>} : memref<8x128xf32, #tpu.memory_space<vmem>>, vector<8x128xf32>,
    return
  }
  func.func @transform_0(%arg0: i32) -> (i32, i32) {
    %c0_i32 = arith.constant 0 : i32
    %c0_i32_0 = arith.constant 0 : i32
    return %arg0, %c0_i32 : i32, i32
  }
  func.func @transform_1(%arg0: i32) -> (i32, i32) {
    %c0_i32 = arith.constant 0 : i32
    %c0_i32_0 = arith.constant 0 : i32
    return %arg0, %c0_i32 : i32, i32
  }
  func.func @transform_2(%arg0: i32) -> (i32, i32) {
    %c0_i32 = arith.constant 0 : i32
    %c0_i32_0 = arith.constant 0 : i32
    return %arg0, %c0_i32 : i32, i32
  }
  func.func @transform_3(%arg0: i32) -> (i32, i32) {
    %c0_i32 = arith.constant 0 : i32
    %c0_i32_0 = arith.constant 0 : i32
    %c0_i32_1 = arith.constant 0 : i32
    return %c0_i32, %c0_i32_0 : i32, i32
  }
  func.func @transform_4(%arg0: i32) -> (i32, i32) {
    %c0_i32 = arith.constant 0 : i32
    %c0_i32_0 = arith.constant 0 : i32
    return %arg0, %c0_i32 : i32, i32
  }
}

</mosaic_0001>

<llo_original>
// kernel: tpu_custom_call.1
$region0: #{tpu_custom_call.1}
  #allocation0 [shape = 'u32[]', space=smem, size = 0x4, offset = 0x4, fixed_abs, tag = 'smem constant byte address 0x4 - core index']
  #allocation1 [shape = 'u32[144,128]{1,0:T(1,128)}', space=vmem, size = 0x12000, scoped, tag = 'internal scratch']
  %s0 = inlined_call_operand.vmem [shape: f32[16,16], index: 0, kind: input, shape index: {}]
  %s1 = inlined_call_operand.vmem [shape: s32[16,1], index: 1, kind: input, shape index: {}]
  %s2 = inlined_call_operand.vmem [shape: f32[16,1], index: 2, kind: input, shape index: {}]
  %s3 = inlined_call_operand.vmem [shape: f32[1,16], index: 3, kind: input, shape index: {}]
  %s4 = inlined_call_operand.hbm [shape: f32[16,128], index: 4, kind: output, shape index: {}]
  %s5 = sld [smem:[#allocation0]]
  $region49: #{tpu_custom_call.1} parent=0
    _
  %s7 = ssub.s32 1, %s5
  %s8 = scalar_select 0, %s7, %s5
  $region1: #{tpu_custom_call.1} parent=0
    #allocation2 [shape = 'u8[8192]{0}', space=vmem, size = 0x2000, scoped, tag = 'output window, operand 0']
    #allocation3 [shape = 's32[2]{0}', space=sflag, size = 0x8, scoped, tag = 'scoped memory for tpu_custom_call.1']
    %9 = vsyncpa [#allocation3], 0
    %s10 = scalar_lea.sflag [#allocation3], 1
    %11 = vsyncpa %s10, 0
    loop: start=0, step=1, limit=4
    $region2: #{tpu_custom_call.1} parent=1 // loop_pre_header
      _
    $region3: #{tpu_custom_call.1} parent=1 // loop_header
      %s13 = sphi 0, %s17
      %p14 = scmp.ge.s32.totalorder %s13, 4
      %s23 = sphi 0, %s25
      %s26 = sphi 0, %s23
      %s27 = sphi 0, %s26
      %s43 = sphi 0, %s27
      %s49 = sphi 0, %s51
      %s52 = sphi 0, %s49
      %s53 = sphi 0, %s52
      %s69 = sphi 0, %s53
      %s75 = sphi 0, %s77
      %s78 = sphi 0, %s75
      %s79 = sphi 0, %s78
      %s95 = sphi 0, %s79
      %s99 = sphi 0, %s99
      %s101 = sphi 0, %s99
      %s102 = sphi 0, %s101
      %s116 = sphi 0, %s102
      %s122 = sphi 0, %s124
      %s125 = sphi 0, %s122
      %s126 = sphi 0, %s125
      %s142 = sphi 0, %s126
    $region4: #{tpu_custom_call.1} parent=1 // loop_header_branch
      %16 = sbr.rel (%p14) target = $region8
    $region5: #{tpu_custom_call.1} parent=1 // loop_body
      %s18 = ssub.s32 %s13, 1
      %s19 = ssub.s32 %s13, 2
      %s20 = sadd.s32 %s13, 1
      %s21 = ssub.s32 %s13, %s20
      %p22 = scmp.eq.s32.totalorder %s21, 0
      %s24 = sadd.s32 %s23, 1
      %s25 = scalar_select %p22, %s23, %s24
      %p28 = pneg %p22
      %p29 = scmp.eq.s32.totalorder %s13, 1
      %p30 = por %p28, %p29
      %p31 = scmp.ne.s32.totalorder %s23, %s26
      %p32 = scmp.eq.s32.totalorder %s13, 0
      %p33 = por %p31, %p32
      %p34 = scmp.ne.s32.totalorder %s23, %s26
      %p35 = scmp.eq.s32.totalorder %s18, 1
      %p36 = por %p34, %p35
      %p37 = scmp.ne.s32.totalorder %s26, %s27
      %p38 = scmp.eq.s32.totalorder %s18, 0
      %p39 = por %p37, %p38
      %p40 = scmp.ne.s32.totalorder %s26, %s27
      %p41 = scmp.eq.s32.totalorder %s19, 1
      %p42 = por %p40, %p41
      %p44 = scmp.ne.s32.totalorder %s27, %s43
      %p45 = scmp.eq.s32.totalorder %s19, 0
      %p46 = por %p44, %p45
      %s47 = ssub.s32 %s13, %s20
      %p48 = scmp.eq.s32.totalorder %s47, 0
      %s50 = sadd.s32 %s49, 1
      %s51 = scalar_select %p48, %s49, %s50
      %p54 = pneg %p48
      %p55 = scmp.eq.s32.totalorder %s13, 1
      %p56 = por %p54, %p55
      %p57 = scmp.ne.s32.totalorder %s49, %s52
      %p58 = scmp.eq.s32.totalorder %s13, 0
      %p59 = por %p57, %p58
      %p60 = scmp.ne.s32.totalorder %s49, %s52
      %p61 = scmp.eq.s32.totalorder %s18, 1
      %p62 = por %p60, %p61
      %p63 = scmp.ne.s32.totalorder %s52, %s53
      %p64 = scmp.eq.s32.totalorder %s18, 0
      %p65 = por %p63, %p64
      %p66 = scmp.ne.s32.totalorder %s52, %s53
      %p67 = scmp.eq.s32.totalorder %s19, 1
      %p68 = por %p66, %p67
      %p70 = scmp.ne.s32.totalorder %s53, %s69
      %p71 = scmp.eq.s32.totalorder %s19, 0
      %p72 = por %p70, %p71
      %s73 = ssub.s32 %s13, %s20
      %p74 = scmp.eq.s32.totalorder %s73, 0
      %s76 = sadd.s32 %s75, 1
      %s77 = scalar_select %p74, %s75, %s76
      %p80 = pneg %p74
      %p81 = scmp.eq.s32.totalorder %s13, 1
      %p82 = por %p80, %p81
      %p83 = scmp.ne.s32.totalorder %s75, %s78
      %p84 = scmp.eq.s32.totalorder %s13, 0
      %p85 = por %p83, %p84
      %p86 = scmp.ne.s32.totalorder %s75, %s78
      %p87 = scmp.eq.s32.totalorder %s18, 1
      %p88 = por %p86, %p87
      %p89 = scmp.ne.s32.totalorder %s78, %s79
      %p90 = scmp.eq.s32.totalorder %s18, 0
      %p91 = por %p89, %p90
      %p92 = scmp.ne.s32.totalorder %s78, %s79
      %p93 = scmp.eq.s32.totalorder %s19, 1
      %p94 = por %p92, %p93
      %p96 = scmp.ne.s32.totalorder %s79, %s95
      %p97 = scmp.eq.s32.totalorder %s19, 0
      %p98 = por %p96, %p97
      %s100 = sadd.s32 %s99, 1
      %p103 = scmp.eq.s32.totalorder %s13, 1
      %p104 = scmp.ne.s32.totalorder %s99, %s101
      %p105 = scmp.eq.s32.totalorder %s13, 0
      %p106 = por %p104, %p105
      %p107 = scmp.ne.s32.totalorder %s99, %s101
      %p108 = scmp.eq.s32.totalorder %s18, 1
      %p109 = por %p107, %p108
      %p110 = scmp.ne.s32.totalorder %s101, %s102
      %p111 = scmp.eq.s32.totalorder %s18, 0
      %p112 = por %p110, %p111
      %p113 = scmp.ne.s32.totalorder %s101, %s102
      %p114 = scmp.eq.s32.totalorder %s19, 1
      %p115 = por %p113, %p114
      %p117 = scmp.ne.s32.totalorder %s102, %s116
      %p118 = scmp.eq.s32.totalorder %s19, 0
      %p119 = por %p117, %p118
      %s120 = ssub.s32 %s13, %s20
      %p121 = scmp.eq.s32.totalorder %s120, 0
      %s123 = sadd.s32 %s122, 1
      %s124 = scalar_select %p121, %s122, %s123
      %p127 = pneg %p121
      %p128 = scmp.eq.s32.totalorder %s13, 1
      %p129 = por %p127, %p128
      %p130 = scmp.ne.s32.totalorder %s122, %s125
      %p131 = scmp.eq.s32.totalorder %s13, 0
      %p132 = por %p130, %p131
      %p133 = scmp.ne.s32.totalorder %s122, %s125
      %p134 = scmp.eq.s32.totalorder %s18, 1
      %p135 = por %p133, %p134
      %p136 = scmp.ne.s32.totalorder %s125, %s126
      %p137 = scmp.eq.s32.totalorder %s18, 0
      %p138 = por %p136, %p137
      %p139 = scmp.ne.s32.totalorder %s125, %s126
      %p140 = scmp.eq.s32.totalorder %s19, 1
      %p141 = por %p139, %p140
      %p143 = scmp.ne.s32.totalorder %s126, %s142
      %p144 = scmp.eq.s32.totalorder %s19, 0
      %p145 = por %p143, %p144
      %p146 = scmp.le.s32.totalorder 1, %s13
      %p147 = scmp.lt.s32.totalorder %s13, 3
      %p148 = pnand %p146, %p147
      %p149 = pneg %p148
      // Predicated region
      $region9: #{tpu_custom_call.1} parent=5 // pred_check
        _
      $region10: #{tpu_custom_call.1} parent=5 // pred_check_branch
        %151 = sbr.rel (%p148) target = $region12
      $region11: #{tpu_custom_call.1} parent=5 // pred_region
        %s152 = ssub.s32 %s13, 1
        // Predicated region
        $region13: #{tpu_custom_call.1} parent=11 // pred_check
          %p153 = pneg %p112
        $region14: #{tpu_custom_call.1} parent=11 // pred_check_branch
          %155 = sbr.rel (%p153) target = $region16
        $region15: #{tpu_custom_call.1} parent=11 // pred_region
          _
        $region16: #{tpu_custom_call.1} parent=11 // pred_fallthru
          _
      $region12: #{tpu_custom_call.1} parent=5 // pred_fallthru
        _
      %p156 = scmp.lt.s32.totalorder %s13, 2
      // Predicated region
      $region17: #{tpu_custom_call.1} parent=5 // pred_check
        %p157 = pneg %p156
      $region18: #{tpu_custom_call.1} parent=5 // pred_check_branch
        %159 = sbr.rel (%p157) target = $region20
      $region19: #{tpu_custom_call.1} parent=5 // pred_region
        // Predicated region
        $region21: #{tpu_custom_call.1} parent=19 // pred_check
          %p160 = pneg %p33
        $region22: #{tpu_custom_call.1} parent=19 // pred_check_branch
          %162 = sbr.rel (%p160) target = $region24
        $region23: #{tpu_custom_call.1} parent=19 // pred_region
          %p163 = scmp.lt.s32.totalorder %s13, 1
          %s164 = scalar_select %p163, %s13, 1
          %s165 = smul.addr %s164, 8
          %s166 = scalar_lea.vmem %s0, %s165
        $region24: #{tpu_custom_call.1} parent=19 // pred_fallthru
          _
        // Predicated region
        $region25: #{tpu_custom_call.1} parent=19 // pred_check
          %p167 = pneg %p59
        $region26: #{tpu_custom_call.1} parent=19 // pred_check_branch
          %169 = sbr.rel (%p167) target = $region28
        $region27: #{tpu_custom_call.1} parent=19 // pred_region
          %p170 = scmp.lt.s32.totalorder %s13, 1
          %s171 = scalar_select %p170, %s13, 1
          %s172 = smul.addr %s171, 8
          %s173 = scalar_lea.vmem %s1, %s172
        $region28: #{tpu_custom_call.1} parent=19 // pred_fallthru
          _
        // Predicated region
        $region29: #{tpu_custom_call.1} parent=19 // pred_check
          %p174 = pneg %p85
        $region30: #{tpu_custom_call.1} parent=19 // pred_check_branch
          %176 = sbr.rel (%p174) target = $region32
        $region31: #{tpu_custom_call.1} parent=19 // pred_region
          %p177 = scmp.lt.s32.totalorder %s13, 1
          %s178 = scalar_select %p177, %s13, 1
          %s179 = smul.addr %s178, 8
          %s180 = scalar_lea.vmem %s2, %s179
        $region32: #{tpu_custom_call.1} parent=19 // pred_fallthru
          _
      $region20: #{tpu_custom_call.1} parent=5 // pred_fallthru
        _
      %p181 = scmp.le.s32.totalorder 1, %s13
      %p182 = scmp.lt.s32.totalorder %s13, 3
      %p183 = pnand %p181, %p182
      %p184 = pneg %p183
      // Predicated region
      $region33: #{tpu_custom_call.1} parent=5 // pred_check
        _
      $region34: #{tpu_custom_call.1} parent=5 // pred_check_branch
        %186 = sbr.rel (%p183) target = $region36
      $region35: #{tpu_custom_call.1} parent=5 // pred_region
        %s187 = ssub.s32 %s13, 1
        %p188 = scmp.lt.s32.totalorder %s18, 1
        %s189 = scalar_select %p188, %s18, 1
        %s190 = smul.addr %s189, 8
        %s191 = scalar_lea.vmem %s0, %s190
        %p192 = pneg %p39
        %p193 = pneg %p36
        %p194 = scmp.lt.s32.totalorder %s18, 1
        %s195 = scalar_select %p194, %s18, 1
        %s196 = smul.addr %s195, 8
        %s197 = scalar_lea.vmem %s1, %s196
        %p198 = pneg %p65
        %p199 = pneg %p62
        %p200 = scmp.lt.s32.totalorder %s18, 1
        %s201 = scalar_select %p200, %s18, 1
        %s202 = smul.addr %s201, 8
        %s203 = scalar_lea.vmem %s2, %s202
        %p204 = pneg %p91
        %p205 = pneg %p88
        %p206 = pneg %p112
        %p207 = pneg %p109
        %p208 = pneg %p138
        %p209 = pneg %p135
        %s210 = sand.u32 %s125, 1
        %s211 = scalar_lea.sflag [#allocation3], %s210
        %s212 = sand.u32 %s125, 1
        %s213 = smul.addr %s212, 8
        %s214 = scalar_lea.vmem [#allocation2], %s213
        %p215 = scmp.lt.s32.totalorder %s18, 1
        %s216 = scalar_select %p215, %s18, 1
        %s217 = smul.addr %s216, 8
        %s218 = scalar_lea.vmem %s0, %s217
        %p219 = scmp.lt.s32.totalorder %s18, 1
        %s220 = scalar_select %p219, %s18, 1
        %s221 = smul.addr %s220, 8
        %s222 = scalar_lea.vmem %s1, %s221
        %p223 = scmp.lt.s32.totalorder %s18, 1
        %s224 = scalar_select %p223, %s18, 1
        %s225 = smul.addr %s224, 8
        %s226 = scalar_lea.vmem %s2, %s225
        %v227 = vld [vmem:[%s218] sm:$0xff]
        %v228 = vld [vmem:[%s3] sm:$0x1]
        %v230 = vlaneseq
        %v231 = vshrl.u32 %v230, 7
        %v232 = vsub.s32 0, %v231
        %v233 = vrot.slane %v228, %v232
        %v235 = vadd.f32 %v227, %v233
        %v236 = vlaneseq
        %v237 = vand.u32 %v236, 127
        %v238 = vld [vmem:[%s222] sm:$0xff]
        %239 = vset.pattern.permute.xlu0 0
        %240 = vperm.xlu0 %239, %v238
        %v241 = vpop.permute.xlu0 %240
        %vm242 = vcmp.eq.s32.totalorder %v237, %v241
        %vm243 = vcmask 130048
        %v244 = vsel %vm243, %v235, -inf
        %245 = vmax.xlane.f32.xlu0 %v244
        %v246 = vpop.xlane.xlu0 %245
        %v247 = vsub.f32 %v235, %v246
        %v248 = vmul.f32 %v247, 1.442695
        %v249 = vpow.pop %v248
        %v250 = vsel %vm243, %v249, 0.0
        %251 = vadd.xlane.f32.xlu0 %v250
        %v252 = vpop.xlane.xlu0 %251
        %v253 = vlog2.pop %v252
        %v254 = vmul.f32 %v253, 0.6931472
        %v255 = vadd.f32 %v246, %v254
        %v256 = vsel %vm242, %v235, 0.0
        %v257 = vsel %vm243, %v256, 0.0
        %258 = vadd.xlane.f32.xlu0 %v257
        %v259 = vpop.xlane.xlu0 %258
        %v260 = vld [vmem:[%s226] sm:$0xff]
        %v261 = vsub.f32 %v255, %v259
        %v262 = vmul.f32 %v260, %v261
        %vm263 = vcmask 7168
        %v264 = vsel %vm263, %v262, 0.0
        %265 = vadd.xlane.f32.xlu0 %v264
        %v266 = vpop.xlane.xlu0 %265
        %v267 = vrot.slane %v266, 4
        %v268 = vadd.f32 %v266, %v267
        %v269 = vrot.slane %v268, 2
        %v270 = vadd.f32 %v268, %v269
        %v271 = vrot.slane %v270, 1
        %v272 = vadd.f32 %v270, %v271
        %s273 = vtos %v272
        %v274 = vsel %vm263, %v260, 0.0
        %275 = vadd.xlane.f32.xlu0 %v274
        %v276 = vpop.xlane.xlu0 %275
        %v277 = vrot.slane %v276, 4
        %v278 = vadd.f32 %v276, %v277
        %v279 = vrot.slane %v278, 2
        %v280 = vadd.f32 %v278, %v279
        %v281 = vrot.slane %v280, 1
        %v282 = vadd.f32 %v280, %v281
        %s283 = vtos %v282
        %v284 = vlaneseq
        %v285 = vshrl.u32 %v284, 7
        %vm286 = vcmp.eq.s32.totalorder %v285, 0
        %vm287 = vcmp.eq.s32.totalorder %v237, 0
        %vm288 = vmand %vm286, %vm287
        %vm289 = vcmp.eq.s32.totalorder %v237, 1
        %vm290 = vmand %vm286, %vm289
        %v291 = vstv %s283
        %v292 = vsel %vm290, %v291, 0.0
        %v293 = vstv %s273
        %v294 = vsel %vm288, %v293, %v292
        %295 = vst [vmem:[%s214] sm:$0xff] %v294
        %s296 = sand.u32 %s125, 1
        %s297 = scalar_lea.sflag [#allocation3], %s296
        %s298 = sand.u32 %s125, 1
        %s299 = smul.addr %s298, 8
        %s300 = scalar_lea.vmem [#allocation2], %s299
        // Predicated region
        $region37: #{tpu_custom_call.1} parent=35 // pred_check
          %p301 = pneg %p135
        $region38: #{tpu_custom_call.1} parent=35 // pred_check_branch
          %303 = sbr.rel (%p301) target = $region40
        $region39: #{tpu_custom_call.1} parent=35 // pred_region
          %s305 = ssub.s32 128, 128
          %306 = vsyncadd %s297, %s305
          %s307 = smul.addr %s18, 128
          %s308 = scalar_lea.hbm %s4, %s307
          %s310 = sshll.u32 %s300, 4
          %s311 = int_to_ptr.vmem [resolvable:$true] %s310
          %313 = dma.vmem_to_hbm [thread:$0]  %s311, 128, %s308, %s297
        $region40: #{tpu_custom_call.1} parent=35 // pred_fallthru
          _
      $region36: #{tpu_custom_call.1} parent=5 // pred_fallthru
        _
      %p314 = scmp.le.s32.totalorder 2, %s13
      // Predicated region
      $region41: #{tpu_custom_call.1} parent=5 // pred_check
        %p315 = pneg %p314
      $region42: #{tpu_custom_call.1} parent=5 // pred_check_branch
        %317 = sbr.rel (%p315) target = $region44
      $region43: #{tpu_custom_call.1} parent=5 // pred_region
        %s318 = ssub.s32 %s13, 2
        // Predicated region
        $region45: #{tpu_custom_call.1} parent=43 // pred_check
          %p319 = pneg %p141
        $region46: #{tpu_custom_call.1} parent=43 // pred_check_branch
          %321 = sbr.rel (%p319) target = $region48
        $region47: #{tpu_custom_call.1} parent=43 // pred_region
          %s322 = sand.u32 %s126, 1
          %s323 = scalar_lea.sflag [#allocation3], %s322
          %s324 = sand.u32 %s126, 1
          %s325 = smul.addr %s324, 8
          %s326 = scalar_lea.vmem [#allocation2], %s325
          %327 = dma.done %s323, 128
        $region48: #{tpu_custom_call.1} parent=43 // pred_fallthru
          _
      $region44: #{tpu_custom_call.1} parent=5 // pred_fallthru
        _
    $region6: #{tpu_custom_call.1} parent=1 // loop_footer
      %s17 = sadd.s32 1, %s13
    $region7: #{tpu_custom_call.1} parent=1 // loop_footer_branch
      %12 = sbr.rel target = $region3
    $region8: #{tpu_custom_call.1} parent=1 // loop_exit
      _
    %328 = vsyncpa [#allocation3], 1
    %s329 = scalar_lea.sflag [#allocation3], 1
    %330 = vsyncpa %s329, 1

</llo_original>
